<compile_context>
chip_gen: v6e
topology: v6e:2x2x1
jax: 0.10.0
libtpu: 0.0.40
codegen_flags: <defaults>
</compile_context>

<pallas_src>
import jax
import jax.numpy as jnp
from jax.experimental import pallas as pl
from jax.experimental.pallas import tpu as pltpu


LANE = 128
_VMEM_BUDGET_BYTES = 24 * 1024 * 1024   # keep working set well inside v7x's 64 MiB
_VMEM_LIMIT_BYTES = 32 * 1024 * 1024    # explicit scoped limit (>= v5e's 16 MiB default)


def _round_up(n, m):
    return ((n + m - 1) // m) * m


def _mlp_kernel(x_ref,
                w1_ref, b1_ref,
                w2_ref, b2_ref,
                w3_ref, b3_ref,
                w4_ref, b4_ref,
                w5_ref, b5_ref,
                o_ref):
    """Fused 5x (matmul + bias + ReLU) on one (tile_b, F) batch tile.

    Weights/biases stay VMEM-resident across all grid steps (constant index_map).
    MXU matmuls run in the weights' dtype (f32 or bf16); accumulation, bias add and
    ReLU are always f32 (v5e's VPU has no bf16, so elementwise math never uses bf16).
    Only lane 0 of the final layer is real, and it is the only thing written back.
    """
    compute_dtype = w1_ref.dtype

    def dense_relu(h, w_ref, b_ref):
        y = jnp.dot(h, w_ref[...], preferred_element_type=jnp.float32)
        return jnp.maximum(y + b_ref[...], 0.0)               # bias + ReLU in f32

    h = x_ref[...]                                            # (tile_b, F)
    h = dense_relu(h, w1_ref, b1_ref).astype(compute_dtype)   # -> (tile_b, 256)
    h = dense_relu(h, w2_ref, b2_ref).astype(compute_dtype)   # -> (tile_b, 128)
    h = dense_relu(h, w3_ref, b3_ref).astype(compute_dtype)   # -> (tile_b, 128)
    h = dense_relu(h, w4_ref, b4_ref).astype(compute_dtype)   # -> (tile_b, 128)
    h = dense_relu(h, w5_ref, b5_ref)                         # -> (tile_b, 128) f32
    o_ref[...] = h[:, :1]                                     # only column 0 is real


def pad_params(params, in_features, compute_dtype):
    """Zero-pad each layer's output width to a lane multiple (inputs stay unpadded).

    Padded W columns / bias lanes are zero and the next layer's padded contraction
    rows are zero, so padded lanes stay exactly 0 through every ReLU layer.
    """
    padded = []
    prev = in_features
    for w, b in params:
        fi, fo = w.shape
        fo_pad = _round_up(fo, LANE)
        wp = jnp.zeros((prev, fo_pad), compute_dtype)
        wp = wp.at[:fi, :fo].set(w.astype(compute_dtype))
        bp = jnp.zeros((1, fo_pad), jnp.float32)
        bp = bp.at[:, :fo].set(b.astype(jnp.float32))
        padded.append((wp, bp))
        prev = fo_pad
    return padded


def _estimate_vmem_bytes(tb, in_features, padded_params, compute_dtype):
    itemsize = jnp.dtype(compute_dtype).itemsize
    total = 2 * tb * in_features * itemsize          # double-buffered x stream
    total += 2 * tb * 1 * 4                          # double-buffered (tb, 1) output
    for w, b in padded_params:
        total += 2 * (w.size * itemsize + b.size * 4)   # (conservatively 2x-buffered)
        total += tb * w.shape[1] * 4                    # f32 intermediate activation
    return total


def _pick_tile_b(batch, requested, vmem_cost_fn):
    tb = max(8, min(_round_up(requested, 8), _round_up(batch, 8)))
    # Give the 'parallel' batch axis >=2 grid steps when the batch allows it, so the
    # second TensorCore on v7x gets work (no-op on v5e/v6e, which have a single TC).
    if batch > 8:
        tb = min(tb, max(8, _round_up(pl.cdiv(batch, 2), 8)))
    # Keep the (double-buffered) working set inside the VMEM budget (v7x: 64 MiB).
    while tb > 8 and vmem_cost_fn(tb) > _VMEM_BUDGET_BYTES:
        tb = max(8, _round_up(tb // 2, 8))
    return tb


def custom_linear_forward(x, params, *, tile_b=512, compute_dtype=jnp.bfloat16):
    """x: (B, F). params: list of 5 unpadded (W (in,out), b (1,out)) f32 tuples."""
    B, F = x.shape
    out_features = params[-1][0].shape[1]            # = 1

    padded_params = pad_params(params, F, compute_dtype)

    # bf16 x halves the dominant HBM read stream. This is a single dtype convert (no
    # padding, no extra pass beyond it); callers can pass bf16 x directly to skip it.
    if x.dtype != compute_dtype:
        x = x.astype(compute_dtype)

    tb = _pick_tile_b(
        B, tile_b,
        lambda t: _estimate_vmem_bytes(t, F, padded_params, compute_dtype))
    grid = (pl.cdiv(B, tb),)      # last tile may be partial; OOB rows are masked away

    flat = [x]
    in_specs = [pl.BlockSpec((tb, F), lambda i: (i, 0))]
    for w, b in padded_params:
        flat.append(w)
        in_specs.append(pl.BlockSpec(w.shape, lambda i: (0, 0)))   # VMEM-resident
        flat.append(b)
        in_specs.append(pl.BlockSpec(b.shape, lambda i: (0, 0)))   # VMEM-resident

    out = pl.pallas_call(
        _mlp_kernel,
        out_shape=jax.ShapeDtypeStruct((B, out_features), jnp.float32),
        grid=grid,
        in_specs=in_specs,
        out_specs=pl.BlockSpec((tb, out_features), lambda i: (i, 0)),
        compiler_params=pltpu.CompilerParams(
            dimension_semantics=("parallel",),   # shard batch tiles across TCs (v7x)
            vmem_limit_bytes=_VMEM_LIMIT_BYTES,
        ),
    )(*flat)
    return out


def init_params(key, input_features):
    """Deterministic PyTorch-style init: U(-1/sqrt(fan_in), 1/sqrt(fan_in))."""
    dims = [input_features, 200, 100, 50, 25, 1]
    params = []
    for i in range(5):
        fan_in, fan_out = dims[i], dims[i + 1]
        key, kw, kb = jax.random.split(key, 3)
        bound = 1.0 / jnp.sqrt(jnp.float32(fan_in))
        w = jax.random.uniform(kw, (fan_in, fan_out), jnp.float32, -bound, bound)
        b = jax.random.uniform(kb, (1, fan_out), jnp.float32, -bound, bound)
        params.append((w, b))
    return params


def reference_forward(x, params):
    h = x
    for w, b in params:
        h = jnp.maximum(h @ w + b, 0.0)     # ReLU after every layer, incl. the last
    return h


if __name__ == "__main__":
    key = jax.random.PRNGKey(0)
    key, kx, kx2 = jax.random.split(key, 3)

    batch, input_features = 8, 32
    x = jax.random.normal(kx, (batch, input_features), jnp.float32)
    params = init_params(key, input_features)
    ref = reference_forward(x, params)

    # Exact f32 MXU path.
    out_f32 = jax.block_until_ready(
        custom_linear_forward(x, params, compute_dtype=jnp.float32))
    assert out_f32.shape == (batch, 1)
    assert jnp.allclose(out_f32, ref, atol=1e-5, rtol=1e-5)

    # Default bf16 path (recommended on v5e/v6e/v7x): bf16 matmul operands, f32
    # accumulate / bias / ReLU. Looser tolerance from bf16 rounding of x/activations.
    out_bf16 = jax.block_until_ready(custom_linear_forward(x, params))
    assert out_bf16.shape == (batch, 1)
    assert jnp.allclose(out_bf16, ref, atol=5e-2, rtol=5e-2)

    # Non-divisible batch exercises the multi-step grid + masked partial last tile.
    batch2 = 70
    x2 = jax.random.normal(kx2, (batch2, input_features), jnp.float32)
    ref2 = reference_forward(x2, params)
    out2 = jax.block_until_ready(
        custom_linear_forward(x2, params, compute_dtype=jnp.float32))
    assert out2.shape == (batch2, 1)
    assert jnp.allclose(out2, ref2, atol=1e-5, rtol=1e-5)

    print("KERNEL_OK")
</pallas_src>

<mosaic_0001>
module attributes {stable_mosaic.version = 11 : i64} {
  func.func @_mlp_kernel(%arg0: i32, %arg1: memref<8x32xf32, #tpu.memory_space<vmem>>, %arg2: memref<32x256xf32, #tpu.memory_space<vmem>>, %arg3: memref<1x256xf32, #tpu.memory_space<vmem>>, %arg4: memref<256x128xf32, #tpu.memory_space<vmem>>, %arg5: memref<1x128xf32, #tpu.memory_space<vmem>>, %arg6: memref<128x128xf32, #tpu.memory_space<vmem>>, %arg7: memref<1x128xf32, #tpu.memory_space<vmem>>, %arg8: memref<128x128xf32, #tpu.memory_space<vmem>>, %arg9: memref<1x128xf32, #tpu.memory_space<vmem>>, %arg10: memref<128x128xf32, #tpu.memory_space<vmem>>, %arg11: memref<1x128xf32, #tpu.memory_space<vmem>>, %arg12: memref<8x1xf32, #tpu.memory_space<vmem>>) attributes {dimension_semantics = [#tpu.dimension_semantics<parallel>], iteration_bounds = array<i64: 1>, scalar_prefetch = 0 : i64, scratch_operands = 0 : i64, tpu.core_type = #tpu.core_type<tc>, window_params = [{transform_indices = @transform_0, window_bounds = array<i64: 8, 32>}, {pipeline_mode = #tpu.pipeline_mode<synchronous>, transform_indices = @transform_1, window_bounds = array<i64: 32, 256>}, {pipeline_mode = #tpu.pipeline_mode<synchronous>, transform_indices = @transform_2, window_bounds = array<i64: 1, 256>}, {pipeline_mode = #tpu.pipeline_mode<synchronous>, transform_indices = @transform_3, window_bounds = array<i64: 256, 128>}, {pipeline_mode = #tpu.pipeline_mode<synchronous>, transform_indices = @transform_4, window_bounds = array<i64: 1, 128>}, {pipeline_mode = #tpu.pipeline_mode<synchronous>, transform_indices = @transform_5, window_bounds = array<i64: 128, 128>}, {pipeline_mode = #tpu.pipeline_mode<synchronous>, transform_indices = @transform_6, window_bounds = array<i64: 1, 128>}, {pipeline_mode = #tpu.pipeline_mode<synchronous>, transform_indices = @transform_7, window_bounds = array<i64: 128, 128>}, {pipeline_mode = #tpu.pipeline_mode<synchronous>, transform_indices = @transform_8, window_bounds = array<i64: 1, 128>}, {pipeline_mode = #tpu.pipeline_mode<synchronous>, transform_indices = @transform_9, window_bounds = array<i64: 128, 128>}, {pipeline_mode = #tpu.pipeline_mode<synchronous>, transform_indices = @transform_10, window_bounds = array<i64: 1, 128>}, {transform_indices = @transform_11, window_bounds = array<i64: 8, 1>}]} {
    %c0 = arith.constant 0 : index
    %c0_0 = arith.constant 0 : index
    %0 = vector.load %arg1[%c0, %c0_0] : memref<8x32xf32, #tpu.memory_space<vmem>>, vector<8x32xf32>
    %c0_1 = arith.constant 0 : index
    %c0_2 = arith.constant 0 : index
    %1 = vector.load %arg2[%c0_1, %c0_2] : memref<32x256xf32, #tpu.memory_space<vmem>>, vector<32x256xf32>
    %cst = arith.constant dense<0.000000e+00> : vector<8x256xf32>
    %2 = tpu.matmul %0, %1, %cst {dimension_numbers = #tpu.dot_dimension_numbers<[1], [0], [0], [1], [0, 0, 1, 1], [], []>} : vector<8x32xf32>, vector<32x256xf32>, vector<8x256xf32> -> vector<8x256xf32>
    %c0_3 = arith.constant 0 : index
    %c0_4 = arith.constant 0 : index
    %3 = vector.load %arg3[%c0_3, %c0_4] : memref<1x256xf32, #tpu.memory_space<vmem>>, vector<1x256xf32>
    %4 = vector.broadcast %3 : vector<1x256xf32> to vector<8x256xf32>
    %5 = arith.addf %2, %4 : vector<8x256xf32>
    %cst_5 = arith.constant 0.000000e+00 : f32
    %6 = vector.broadcast %cst_5 : f32 to vector<8x256xf32>
    %7 = arith.maximumf %5, %6 : vector<8x256xf32>
    %c0_6 = arith.constant 0 : index
    %c0_7 = arith.constant 0 : index
    %8 = vector.load %arg4[%c0_6, %c0_7] : memref<256x128xf32, #tpu.memory_space<vmem>>, vector<256x128xf32>
    %cst_8 = arith.constant dense<0.000000e+00> : vector<8x128xf32>
    %9 = tpu.matmul %7, %8, %cst_8 {dimension_numbers = #tpu.dot_dimension_numbers<[1], [0], [0], [1], [0, 0, 1, 1], [], []>} : vector<8x256xf32>, vector<256x128xf32>, vector<8x128xf32> -> vector<8x128xf32>
    %c0_9 = arith.constant 0 : index
    %c0_10 = arith.constant 0 : index
    %10 = vector.load %arg5[%c0_9, %c0_10] : memref<1x128xf32, #tpu.memory_space<vmem>>, vector<1x128xf32>
    %11 = vector.broadcast %10 : vector<1x128xf32> to vector<8x128xf32>
    %12 = arith.addf %9, %11 : vector<8x128xf32>
    %cst_11 = arith.constant 0.000000e+00 : f32
    %13 = vector.broadcast %cst_11 : f32 to vector<8x128xf32>
    %14 = arith.maximumf %12, %13 : vector<8x128xf32>
    %c0_12 = arith.constant 0 : index
    %c0_13 = arith.constant 0 : index
    %15 = vector.load %arg6[%c0_12, %c0_13] : memref<128x128xf32, #tpu.memory_space<vmem>>, vector<128x128xf32>
    %cst_14 = arith.constant dense<0.000000e+00> : vector<8x128xf32>
    %16 = tpu.matmul %14, %15, %cst_14 {dimension_numbers = #tpu.dot_dimension_numbers<[1], [0], [0], [1], [0, 0, 1, 1], [], []>} : vector<8x128xf32>, vector<128x128xf32>, vector<8x128xf32> -> vector<8x128xf32>
    %c0_15 = arith.constant 0 : index
    %c0_16 = arith.constant 0 : index
    %17 = vector.load %arg7[%c0_15, %c0_16] : memref<1x128xf32, #tpu.memory_space<vmem>>, vector<1x128xf32>
    %18 = vector.broadcast %17 : vector<1x128xf32> to vector<8x128xf32>
    %19 = arith.addf %16, %18 : vector<8x128xf32>
    %cst_17 = arith.constant 0.000000e+00 : f32
    %20 = vector.broadcast %cst_17 : f32 to vector<8x128xf32>
    %21 = arith.maximumf %19, %20 : vector<8x128xf32>
    %c0_18 = arith.constant 0 : index
    %c0_19 = arith.constant 0 : index
    %22 = vector.load %arg8[%c0_18, %c0_19] : memref<128x128xf32, #tpu.memory_space<vmem>>, vector<128x128xf32>
    %cst_20 = arith.constant dense<0.000000e+00> : vector<8x128xf32>
    %23 = tpu.matmul %21, %22, %cst_20 {dimension_numbers = #tpu.dot_dimension_numbers<[1], [0], [0], [1], [0, 0, 1, 1], [], []>} : vector<8x128xf32>, vector<128x128xf32>, vector<8x128xf32> -> vector<8x128xf32>
    %c0_21 = arith.constant 0 : index
    %c0_22 = arith.constant 0 : index
    %24 = vector.load %arg9[%c0_21, %c0_22] : memref<1x128xf32, #tpu.memory_space<vmem>>, vector<1x128xf32>
    %25 = vector.broadcast %24 : vector<1x128xf32> to vector<8x128xf32>
    %26 = arith.addf %23, %25 : vector<8x128xf32>
    %cst_23 = arith.constant 0.000000e+00 : f32
    %27 = vector.broadcast %cst_23 : f32 to vector<8x128xf32>
    %28 = arith.maximumf %26, %27 : vector<8x128xf32>
    %c0_24 = arith.constant 0 : index
    %c0_25 = arith.constant 0 : index
    %29 = vector.load %arg10[%c0_24, %c0_25] : memref<128x128xf32, #tpu.memory_space<vmem>>, vector<128x128xf32>
    %cst_26 = arith.constant dense<0.000000e+00> : vector<8x128xf32>
    %30 = tpu.matmul %28, %29, %cst_26 {dimension_numbers = #tpu.dot_dimension_numbers<[1], [0], [0], [1], [0, 0, 1, 1], [], []>} : vector<8x128xf32>, vector<128x128xf32>, vector<8x128xf32> -> vector<8x128xf32>
    %c0_27 = arith.constant 0 : index
    %c0_28 = arith.constant 0 : index
    %31 = vector.load %arg11[%c0_27, %c0_28] : memref<1x128xf32, #tpu.memory_space<vmem>>, vector<1x128xf32>
    %32 = vector.broadcast %31 : vector<1x128xf32> to vector<8x128xf32>
    %33 = arith.addf %30, %32 : vector<8x128xf32>
    %cst_29 = arith.constant 0.000000e+00 : f32
    %34 = vector.broadcast %cst_29 : f32 to vector<8x128xf32>
    %35 = arith.maximumf %33, %34 : vector<8x128xf32>
    %36 = vector.extract_strided_slice %35 {offsets = [0, 0], sizes = [8, 1], strides = [1, 1]} : vector<8x128xf32> to vector<8x1xf32>
    %c0_30 = arith.constant 0 : index
    %c0_31 = arith.constant 0 : index
    %37 = vector.load %arg12[%c0_30, %c0_31] : memref<8x1xf32, #tpu.memory_space<vmem>>, vector<8x1xf32>
    tpu.vector_store %arg12[%c0_30, %c0_31], %36 {strides = array<i32>} : memref<8x1xf32, #tpu.memory_space<vmem>>, vector<8x1xf32>,
    return
  }
  func.func @transform_0(%arg0: i32) -> (i32, i32) {
    %c0_i32 = arith.constant 0 : i32
    %c0_i32_0 = arith.constant 0 : i32
    return %arg0, %c0_i32 : i32, i32
  }
  func.func @transform_1(%arg0: i32) -> (i32, i32) {
    %c0_i32 = arith.constant 0 : i32
    %c0_i32_0 = arith.constant 0 : i32
    %c0_i32_1 = arith.constant 0 : i32
    return %c0_i32, %c0_i32_0 : i32, i32
  }
  func.func @transform_2(%arg0: i32) -> (i32, i32) {
    %c0_i32 = arith.constant 0 : i32
    %c0_i32_0 = arith.constant 0 : i32
    %c0_i32_1 = arith.constant 0 : i32
    return %c0_i32, %c0_i32_0 : i32, i32
  }
  func.func @transform_3(%arg0: i32) -> (i32, i32) {
    %c0_i32 = arith.constant 0 : i32
    %c0_i32_0 = arith.constant 0 : i32
    %c0_i32_1 = arith.constant 0 : i32
    return %c0_i32, %c0_i32_0 : i32, i32
  }
  func.func @transform_4(%arg0: i32) -> (i32, i32) {
    %c0_i32 = arith.constant 0 : i32
    %c0_i32_0 = arith.constant 0 : i32
    %c0_i32_1 = arith.constant 0 : i32
    return %c0_i32, %c0_i32_0 : i32, i32
  }
  func.func @transform_5(%arg0: i32) -> (i32, i32) {
    %c0_i32 = arith.constant 0 : i32
    %c0_i32_0 = arith.constant 0 : i32
    %c0_i32_1 = arith.constant 0 : i32
    return %c0_i32, %c0_i32_0 : i32, i32
  }
  func.func @transform_6(%arg0: i32) -> (i32, i32) {
    %c0_i32 = arith.constant 0 : i32
    %c0_i32_0 = arith.constant 0 : i32
    %c0_i32_1 = arith.constant 0 : i32
    return %c0_i32, %c0_i32_0 : i32, i32
  }
  func.func @transform_7(%arg0: i32) -> (i32, i32) {
    %c0_i32 = arith.constant 0 : i32
    %c0_i32_0 = arith.constant 0 : i32
    %c0_i32_1 = arith.constant 0 : i32
    return %c0_i32, %c0_i32_0 : i32, i32
  }
  func.func @transform_8(%arg0: i32) -> (i32, i32) {
    %c0_i32 = arith.constant 0 : i32
    %c0_i32_0 = arith.constant 0 : i32
    %c0_i32_1 = arith.constant 0 : i32
    return %c0_i32, %c0_i32_0 : i32, i32
  }
  func.func @transform_9(%arg0: i32) -> (i32, i32) {
    %c0_i32 = arith.constant 0 : i32
    %c0_i32_0 = arith.constant 0 : i32
    %c0_i32_1 = arith.constant 0 : i32
    return %c0_i32, %c0_i32_0 : i32, i32
  }
  func.func @transform_10(%arg0: i32) -> (i32, i32) {
    %c0_i32 = arith.constant 0 : i32
    %c0_i32_0 = arith.constant 0 : i32
    %c0_i32_1 = arith.constant 0 : i32
    return %c0_i32, %c0_i32_0 : i32, i32
  }
  func.func @transform_11(%arg0: i32) -> (i32, i32) {
    %c0_i32 = arith.constant 0 : i32
    %c0_i32_0 = arith.constant 0 : i32
    return %arg0, %c0_i32 : i32, i32
  }
}

</mosaic_0001>

<llo_original>
// kernel: tpu_custom_call.1
$region0: #{tpu_custom_call.1}
  #allocation0 [shape = 'u32[]', space=smem, size = 0x4, offset = 0x4, fixed_abs, tag = 'smem constant byte address 0x4 - core index']
  #allocation1 [shape = 'u32[144,128]{1,0:T(1,128)}', space=vmem, size = 0x12000, scoped, tag = 'internal scratch']
  %s0 = inlined_call_operand.hbm [shape: f32[8,32], index: 0, kind: input, shape index: {}]
  %s1 = inlined_call_operand.hbm [shape: f32[32,256], index: 1, kind: input, shape index: {}]
  %s2 = inlined_call_operand.vmem [shape: f32[1,256], index: 2, kind: input, shape index: {}]
  %s3 = inlined_call_operand.hbm [shape: f32[256,128], index: 3, kind: input, shape index: {}]
  %s4 = inlined_call_operand.vmem [shape: f32[1,128], index: 4, kind: input, shape index: {}]
  %s5 = inlined_call_operand.hbm [shape: f32[128,128], index: 5, kind: input, shape index: {}]
  %s6 = inlined_call_operand.vmem [shape: f32[1,128], index: 6, kind: input, shape index: {}]
  %s7 = inlined_call_operand.hbm [shape: f32[128,128], index: 7, kind: input, shape index: {}]
  %s8 = inlined_call_operand.vmem [shape: f32[1,128], index: 8, kind: input, shape index: {}]
  %s9 = inlined_call_operand.hbm [shape: f32[128,128], index: 9, kind: input, shape index: {}]
  %s10 = inlined_call_operand.vmem [shape: f32[1,128], index: 10, kind: input, shape index: {}]
  %s11 = inlined_call_operand.vmem [shape: f32[8,1], index: 11, kind: output, shape index: {}]
  %s12 = sld [smem:[#allocation0]]
  $region78: #{tpu_custom_call.1} parent=0
    _
  %s14 = ssub.s32 1, %s12
  %s15 = scalar_select 0, %s14, %s12
  $region1: #{tpu_custom_call.1} parent=0
    #allocation2 [shape = 'u8[4096]{0}', space=vmem, size = 0x1000, scoped, tag = 'input window, operand 0, single buffered']
    #allocation3 [shape = 's32[1]{0}', space=sflag, size = 0x4, scoped, tag = 'scoped memory for tpu_custom_call.1']
    #allocation4 [shape = 'u8[32768]{0}', space=vmem, size = 0x8000, scoped, tag = 'input window, operand 1, single buffered']
    #allocation5 [shape = 's32[1]{0}', space=sflag, size = 0x4, scoped, tag = 'scoped memory for tpu_custom_call.1']
    #allocation6 [shape = 'u8[131072]{0}', space=vmem, size = 0x20000, scoped, tag = 'input window, operand 3, single buffered']
    #allocation7 [shape = 'u8[65536]{0}', space=vmem, size = 0x10000, scoped, tag = 'input window, operand 5, single buffered']
    #allocation8 [shape = 's32[1]{0}', space=sflag, size = 0x4, scoped, tag = 'scoped memory for tpu_custom_call.1']
    #allocation9 [shape = 'u8[65536]{0}', space=vmem, size = 0x10000, scoped, tag = 'input window, operand 7, single buffered']
    #allocation10 [shape = 'u8[65536]{0}', space=vmem, size = 0x10000, scoped, tag = 'input window, operand 9, single buffered']
    #allocation11 [shape = 's32[1]{0}', space=sflag, size = 0x4, scoped, tag = 'scoped memory for tpu_custom_call.1']
    %16 = vsyncpa [#allocation3], 0
    %17 = vsyncpa [#allocation5], 0
    %18 = vsyncpa [#allocation8], 0
    %19 = vsyncpa [#allocation11], 0
    // Predicated region
    $region2: #{tpu_custom_call.1} parent=1 // pred_check
      _
    $region3: #{tpu_custom_call.1} parent=1 // pred_check_branch
      %21 = sbr.rel (0) target = $region5
    $region4: #{tpu_custom_call.1} parent=1 // pred_region
      %s23 = ssub.s32 128, 128
      %24 = vsyncadd [#allocation3], %s23
      %s26 = sshll.u32 [#allocation2], 4
      %s27 = int_to_ptr.vmem [resolvable:$true] %s26
      %29 = dma.hbm_to_vmem [thread:$0]  %s0, 128, %s27, [#allocation3]
    $region5: #{tpu_custom_call.1} parent=1 // pred_fallthru
      _
    // Predicated region
    $region6: #{tpu_custom_call.1} parent=1 // pred_check
      _
    $region7: #{tpu_custom_call.1} parent=1 // pred_check_branch
      %31 = sbr.rel (0) target = $region9
    $region8: #{tpu_custom_call.1} parent=1 // pred_region
      %s33 = ssub.s32 1024, 1024
      %34 = vsyncadd [#allocation5], %s33
      %s35 = sshll.u32 [#allocation4], 4
      %s36 = int_to_ptr.vmem [resolvable:$true] %s35
      %41 = dma.hbm_to_vmem [thread:$0]  %s1, 1024, %s36, [#allocation5], 256, 256, 16
    $region9: #{tpu_custom_call.1} parent=1 // pred_fallthru
      _
    // Predicated region
    $region10: #{tpu_custom_call.1} parent=1 // pred_check
      _
    $region11: #{tpu_custom_call.1} parent=1 // pred_check_branch
      %43 = sbr.rel (0) target = $region13
    $region12: #{tpu_custom_call.1} parent=1 // pred_region
      _
    $region13: #{tpu_custom_call.1} parent=1 // pred_fallthru
      _
    // Predicated region
    $region14: #{tpu_custom_call.1} parent=1 // pred_check
      _
    $region15: #{tpu_custom_call.1} parent=1 // pred_check_branch
      %45 = sbr.rel (0) target = $region17
    $region16: #{tpu_custom_call.1} parent=1 // pred_region
      %s47 = ssub.s32 4096, 4096
      %48 = vsyncadd [#allocation5], %s47
      %s49 = sshll.u32 [#allocation6], 4
      %s50 = int_to_ptr.vmem [resolvable:$true] %s49
      %55 = dma.hbm_to_vmem [thread:$0]  %s3, 4096, %s50, [#allocation5], 128, 128, 8
    $region17: #{tpu_custom_call.1} parent=1 // pred_fallthru
      _
    // Predicated region
    $region18: #{tpu_custom_call.1} parent=1 // pred_check
      _
    $region19: #{tpu_custom_call.1} parent=1 // pred_check_branch
      %57 = sbr.rel (0) target = $region21
    $region20: #{tpu_custom_call.1} parent=1 // pred_region
      _
    $region21: #{tpu_custom_call.1} parent=1 // pred_fallthru
      _
    // Predicated region
    $region22: #{tpu_custom_call.1} parent=1 // pred_check
      _
    $region23: #{tpu_custom_call.1} parent=1 // pred_check_branch
      %59 = sbr.rel (0) target = $region25
    $region24: #{tpu_custom_call.1} parent=1 // pred_region
      %s61 = ssub.s32 2048, 2048
      %62 = vsyncadd [#allocation8], %s61
      %s63 = sshll.u32 [#allocation7], 4
      %s64 = int_to_ptr.vmem [resolvable:$true] %s63
      %69 = dma.hbm_to_vmem [thread:$0]  %s5, 2048, %s64, [#allocation8], 128, 128, 8
    $region25: #{tpu_custom_call.1} parent=1 // pred_fallthru
      _
    // Predicated region
    $region26: #{tpu_custom_call.1} parent=1 // pred_check
      _
    $region27: #{tpu_custom_call.1} parent=1 // pred_check_branch
      %71 = sbr.rel (0) target = $region29
    $region28: #{tpu_custom_call.1} parent=1 // pred_region
      _
    $region29: #{tpu_custom_call.1} parent=1 // pred_fallthru
      _
    // Predicated region
    $region30: #{tpu_custom_call.1} parent=1 // pred_check
      _
    $region31: #{tpu_custom_call.1} parent=1 // pred_check_branch
      %73 = sbr.rel (0) target = $region33
    $region32: #{tpu_custom_call.1} parent=1 // pred_region
      %s75 = ssub.s32 2048, 2048
      %76 = vsyncadd [#allocation8], %s75
      %s77 = sshll.u32 [#allocation9], 4
      %s78 = int_to_ptr.vmem [resolvable:$true] %s77
      %83 = dma.hbm_to_vmem [thread:$0]  %s7, 2048, %s78, [#allocation8], 128, 128, 8
    $region33: #{tpu_custom_call.1} parent=1 // pred_fallthru
      _
    // Predicated region
    $region34: #{tpu_custom_call.1} parent=1 // pred_check
      _
    $region35: #{tpu_custom_call.1} parent=1 // pred_check_branch
      %85 = sbr.rel (0) target = $region37
    $region36: #{tpu_custom_call.1} parent=1 // pred_region
      _
    $region37: #{tpu_custom_call.1} parent=1 // pred_fallthru
      _
    // Predicated region
    $region38: #{tpu_custom_call.1} parent=1 // pred_check
      _
    $region39: #{tpu_custom_call.1} parent=1 // pred_check_branch
      %87 = sbr.rel (0) target = $region41
    $region40: #{tpu_custom_call.1} parent=1 // pred_region
      %s89 = ssub.s32 2048, 2048
      %90 = vsyncadd [#allocation11], %s89
      %s91 = sshll.u32 [#allocation10], 4
      %s92 = int_to_ptr.vmem [resolvable:$true] %s91
      %97 = dma.hbm_to_vmem [thread:$0]  %s9, 2048, %s92, [#allocation11], 128, 128, 8
    $region41: #{tpu_custom_call.1} parent=1 // pred_fallthru
      _
    // Predicated region
    $region42: #{tpu_custom_call.1} parent=1 // pred_check
      _
    $region43: #{tpu_custom_call.1} parent=1 // pred_check_branch
      %99 = sbr.rel (0) target = $region45
    $region44: #{tpu_custom_call.1} parent=1 // pred_region
      _
    $region45: #{tpu_custom_call.1} parent=1 // pred_fallthru
      _
    // Predicated region
    $region46: #{tpu_custom_call.1} parent=1 // pred_check
      _
    $region47: #{tpu_custom_call.1} parent=1 // pred_check_branch
      %101 = sbr.rel (0) target = $region49
    $region48: #{tpu_custom_call.1} parent=1 // pred_region
      %102 = dma.done [#allocation3], 128
    $region49: #{tpu_custom_call.1} parent=1 // pred_fallthru
      _
    // Predicated region
    $region50: #{tpu_custom_call.1} parent=1 // pred_check
      _
    $region51: #{tpu_custom_call.1} parent=1 // pred_check_branch
      %104 = sbr.rel (0) target = $region53
    $region52: #{tpu_custom_call.1} parent=1 // pred_region
      %105 = dma.done [#allocation5], 1024
    $region53: #{tpu_custom_call.1} parent=1 // pred_fallthru
      _
    // Predicated region
    $region54: #{tpu_custom_call.1} parent=1 // pred_check
      _
    $region55: #{tpu_custom_call.1} parent=1 // pred_check_branch
      %107 = sbr.rel (0) target = $region57
    $region56: #{tpu_custom_call.1} parent=1 // pred_region
      %108 = dma.done [#allocation5], 4096
    $region57: #{tpu_custom_call.1} parent=1 // pred_fallthru
      _
    // Predicated region
    $region58: #{tpu_custom_call.1} parent=1 // pred_check
      _
    $region59: #{tpu_custom_call.1} parent=1 // pred_check_branch
      %110 = sbr.rel (0) target = $region61
    $region60: #{tpu_custom_call.1} parent=1 // pred_region
      %111 = dma.done [#allocation8], 2048
    $region61: #{tpu_custom_call.1} parent=1 // pred_fallthru
      _
    // Predicated region
    $region62: #{tpu_custom_call.1} parent=1 // pred_check
      _
    $region63: #{tpu_custom_call.1} parent=1 // pred_check_branch
      %113 = sbr.rel (0) target = $region65
    $region64: #{tpu_custom_call.1} parent=1 // pred_region
      %114 = dma.done [#allocation8], 2048
    $region65: #{tpu_custom_call.1} parent=1 // pred_fallthru
      _
    // Predicated region
    $region66: #{tpu_custom_call.1} parent=1 // pred_check
      _
    $region67: #{tpu_custom_call.1} parent=1 // pred_check_branch
      %116 = sbr.rel (0) target = $region69
    $region68: #{tpu_custom_call.1} parent=1 // pred_region
      %117 = dma.done [#allocation11], 2048
    $region69: #{tpu_custom_call.1} parent=1 // pred_fallthru
      _
    %v118 = vld [vmem:[#allocation2] sm:$0xff]
    %v119 = vld [vmem:[#allocation4] sm:$0xff]
    %v120 = vld [vmem:[#allocation4 + $0x8] sm:$0xff]
    %v121 = vld [vmem:[#allocation4 + $0x10] sm:$0xff]
    %v122 = vld [vmem:[#allocation4 + $0x18] sm:$0xff]
    %v123 = vld [vmem:[#allocation4 + $0x20] sm:$0xff]
    %v124 = vld [vmem:[#allocation4 + $0x28] sm:$0xff]
    %v125 = vld [vmem:[#allocation4 + $0x30] sm:$0xff]
    %v126 = vld [vmem:[#allocation4 + $0x38] sm:$0xff]
    %v127 = vld [vmem:[%s2] sm:$0x3]
    %v129 = vlaneseq
    %v130 = vshrl.u32 %v129, 7
    %v131 = vsub.s32 0, %v130
    %v132 = vrot.slane %v127, %v131
    %v133 = vlaneseq
    %v134 = vshrl.u32 %v133, 7
    %v135 = vsub.s32 1, %v134
    %v136 = vrot.slane %v127, %v135
    %vm139 = vcmask 261120
    %v141 = vsel %vm139, %v118, 0
    %143 = vmatprep.subr.mxu0 0.0
    %144 = vmatpush1.msra.mxu0 0.0
    %145 = vmatprep.subr.mxu0 0.0
    %146 = vmatpush1.msra.mxu0 0.0
    %147 = vmatprep.subr.mxu0 0.0
    %148 = vmatpush1.msra.mxu0 0.0
    %149 = vmatprep.subr.mxu0 0.0
    %150 = vmatpush1.msra.mxu0 0.0
    %151 = vmatprep.subr.mxu0 0.0
    %152 = vmatpush1.msra.mxu0 0.0
    %153 = vmatprep.subr.mxu0 0.0
    %154 = vmatpush1.msra.mxu0 0.0
    %155 = vmatprep.subr.mxu0 0.0
    %156 = vmatpush1.msra.mxu0 0.0
    %157 = vmatprep.subr.mxu0 0.0
    %158 = vmatpush1.msra.mxu0 0.0
    %159 = vmatprep.subr.mxu0 0.0
    %160 = vmatpush1.msra.mxu0 0.0
    %161 = vmatprep.subr.mxu0 0.0
    %162 = vmatpush1.msra.mxu0 0.0
    %163 = vmatprep.subr.mxu0 0.0
    %164 = vmatpush1.msra.mxu0 0.0
    %165 = vmatprep.subr.mxu0 0.0
    %166 = vmatpush1.msra.mxu0 0.0
    %167 = vmatprep.subr.mxu0 %v126
    %168 = vmatpush1.msra.mxu0 %v125
    %169 = vmatprep.subr.mxu0 %v124
    %170 = vmatpush1.msra.mxu0 %v123
    %171 = vmatprep.subr.mxu0 %v122
    %172 = vmatpush1.msra.mxu0 %v121
    %173 = vmatprep.subr.mxu0 %v120
    %174 = vmatpush1.msra.mxu0 %v119
    %175 = vmatprep.subr.mxu0 0.0
    %176 = vmatpush2.msra.mxu0 0.0
    %177 = vmatprep.subr.mxu0 0.0
    %178 = vmatpush2.msra.mxu0 0.0
    %179 = vmatprep.subr.mxu0 0.0
    %180 = vmatpush2.msra.mxu0 0.0
    %181 = vmatprep.subr.mxu0 0.0
    %182 = vmatpush2.msra.mxu0 0.0
    %183 = vmatprep.subr.mxu0 0.0
    %184 = vmatpush2.msra.mxu0 0.0
    %185 = vmatprep.subr.mxu0 0.0
    %186 = vmatpush2.msra.mxu0 0.0
    %187 = vmatprep.subr.mxu0 0.0
    %188 = vmatpush2.msra.mxu0 0.0
    %189 = vmatprep.subr.mxu0 0.0
    %190 = vmatpush2.msra.mxu0 0.0
    %191 = vmatprep.subr.mxu0 0.0
    %192 = vmatpush2.msra.mxu0 0.0
    %193 = vmatprep.subr.mxu0 0.0
    %194 = vmatpush2.msra.mxu0 0.0
    %195 = vmatprep.subr.mxu0 0.0
    %196 = vmatpush2.msra.mxu0 0.0
    %197 = vmatprep.subr.mxu0 0.0
    %198 = vmatpush2.msra.mxu0 0.0
    %199 = vmatprep.subr.mxu0 0.0
    %200 = vmatpush2.msra.mxu0 0.0
    %201 = vmatprep.subr.mxu0 0.0
    %202 = vmatpush2.msra.mxu0 0.0
    %203 = vmatprep.subr.mxu0 0.0
    %204 = vmatpush2.msra.mxu0 0.0
    %205 = vmatprep.subr.mxu0 0.0
    %206 = vmatpush2.msra.mxu0 0.0
    %207 = vmatprep.mubr.f32.mxu0 0.0
    %208 = vmatmul.mubr.f32.gmra.mxu0 %v141
    %v209 = vpop.f32.mrf.mxu0
    %v210 = vadd.f32 %v132, %v209
    %v211 = vpop.f32.mrf.mxu0
    %v212 = vadd.f32 %v136, %v211
    %213 = vdwg.mxu0
    %v214 = vmax.f32 %v210, 0.0
    %v215 = vmax.f32 %v212, 0.0
    %v216 = vld [vmem:[#allocation6] sm:$0xff]
    %v217 = vld [vmem:[#allocation6 + $0x8] sm:$0xff]
    %v218 = vld [vmem:[#allocation6 + $0x10] sm:$0xff]
    %v219 = vld [vmem:[#allocation6 + $0x18] sm:$0xff]
    %v220 = vld [vmem:[#allocation6 + $0x20] sm:$0xff]
    %v221 = vld [vmem:[#allocation6 + $0x28] sm:$0xff]
    %v222 = vld [vmem:[#allocation6 + $0x30] sm:$0xff]
    %v223 = vld [vmem:[#allocation6 + $0x38] sm:$0xff]
    %v224 = vld [vmem:[#allocation6 + $0x40] sm:$0xff]
    %v225 = vld [vmem:[#allocation6 + $0x48] sm:$0xff]
    %v226 = vld [vmem:[#allocation6 + $0x50] sm:$0xff]
    %v227 = vld [vmem:[#allocation6 + $0x58] sm:$0xff]
    %v228 = vld [vmem:[#allocation6 + $0x60] sm:$0xff]
    %v229 = vld [vmem:[#allocation6 + $0x68] sm:$0xff]
    %v230 = vld [vmem:[#allocation6 + $0x70] sm:$0xff]
    %v231 = vld [vmem:[#allocation6 + $0x78] sm:$0xff]
    %v232 = vld [vmem:[#allocation6 + $0x80] sm:$0xff]
    %v233 = vld [vmem:[#allocation6 + $0x88] sm:$0xff]
    %v234 = vld [vmem:[#allocation6 + $0x90] sm:$0xff]
    %v235 = vld [vmem:[#allocation6 + $0x98] sm:$0xff]
    %v236 = vld [vmem:[#allocation6 + $0xa0] sm:$0xff]
    %v237 = vld [vmem:[#allocation6 + $0xa8] sm:$0xff]
    %v238 = vld [vmem:[#allocation6 + $0xb0] sm:$0xff]
    %v239 = vld [vmem:[#allocation6 + $0xb8] sm:$0xff]
    %v240 = vld [vmem:[#allocation6 + $0xc0] sm:$0xff]
    %v241 = vld [vmem:[#allocation6 + $0xc8] sm:$0xff]
    %v242 = vld [vmem:[#allocation6 + $0xd0] sm:$0xff]
    %v243 = vld [vmem:[#allocation6 + $0xd8] sm:$0xff]
    %v244 = vld [vmem:[#allocation6 + $0xe0] sm:$0xff]
    %v245 = vld [vmem:[#allocation6 + $0xe8] sm:$0xff]
    %v246 = vld [vmem:[#allocation6 + $0xf0] sm:$0xff]
    %v247 = vld [vmem:[#allocation6 + $0xf8] sm:$0xff]
    %v248 = vld [vmem:[%s4] sm:$0x1]
    %v250 = vlaneseq
    %v251 = vshrl.u32 %v250, 7
    %v252 = vsub.s32 0, %v251
    %v253 = vrot.slane %v248, %v252
    %255 = vmatprep.subr.mxu0 0.0
    %256 = vmatpush1.msra.mxu0 %v231
    %257 = vmatprep.subr.mxu0 0.0
    %258 = vmatpush1.msra.mxu0 %v230
    %259 = vmatprep.subr.mxu0 0.0
    %260 = vmatpush1.msra.mxu0 %v229
    %261 = vmatprep.subr.mxu0 0.0
    %262 = vmatpush1.msra.mxu0 %v228
    %263 = vmatprep.subr.mxu0 0.0
    %264 = vmatpush1.msra.mxu0 %v227
    %265 = vmatprep.subr.mxu0 0.0
    %266 = vmatpush1.msra.mxu0 %v226
    %267 = vmatprep.subr.mxu0 0.0
    %268 = vmatpush1.msra.mxu0 %v225
    %269 = vmatprep.subr.mxu0 0.0
    %270 = vmatpush1.msra.mxu0 %v224
    %271 = vmatprep.subr.mxu0 0.0
    %272 = vmatpush1.msra.mxu0 %v223
    %273 = vmatprep.subr.mxu0 0.0
    %274 = vmatpush1.msra.mxu0 %v222
    %275 = vmatprep.subr.mxu0 0.0
    %276 = vmatpush1.msra.mxu0 %v221
    %277 = vmatprep.subr.mxu0 0.0
    %278 = vmatpush1.msra.mxu0 %v220
    %279 = vmatprep.subr.mxu0 0.0
    %280 = vmatpush1.msra.mxu0 %v219
    %281 = vmatprep.subr.mxu0 0.0
    %282 = vmatpush1.msra.mxu0 %v218
    %283 = vmatprep.subr.mxu0 0.0
    %284 = vmatpush1.msra.mxu0 %v217
    %285 = vmatprep.subr.mxu0 0.0
    %286 = vmatpush1.msra.mxu0 %v216
    %287 = vmatprep.subr.mxu0 0.0
    %288 = vmatpush2.msra.mxu0 %v247
    %289 = vmatprep.subr.mxu0 0.0
    %290 = vmatpush2.msra.mxu0 %v246
    %291 = vmatprep.subr.mxu0 0.0
    %292 = vmatpush2.msra.mxu0 %v245
    %293 = vmatprep.subr.mxu0 0.0
    %294 = vmatpush2.msra.mxu0 %v244
    %295 = vmatprep.subr.mxu0 0.0
    %296 = vmatpush2.msra.mxu0 %v243
    %297 = vmatprep.subr.mxu0 0.0
    %298 = vmatpush2.msra.mxu0 %v242
    %299 = vmatprep.subr.mxu0 0.0
    %300 = vmatpush2.msra.mxu0 %v241
    %301 = vmatprep.subr.mxu0 0.0
    %302 = vmatpush2.msra.mxu0 %v240
    %303 = vmatprep.subr.mxu0 0.0
    %304 = vmatpush2.msra.mxu0 %v239
    %305 = vmatprep.subr.mxu0 0.0
    %306 = vmatpush2.msra.mxu0 %v238
    %307 = vmatprep.subr.mxu0 0.0
    %308 = vmatpush2.msra.mxu0 %v237
    %309 = vmatprep.subr.mxu0 0.0
    %310 = vmatpush2.msra.mxu0 %v236
    %311 = vmatprep.subr.mxu0 0.0
    %312 = vmatpush2.msra.mxu0 %v235
    %313 = vmatprep.subr.mxu0 0.0
    %314 = vmatpush2.msra.mxu0 %v234
    %315 = vmatprep.subr.mxu0 0.0
    %316 = vmatpush2.msra.mxu0 %v233
    %317 = vmatprep.subr.mxu0 0.0
    %318 = vmatpush2.msra.mxu0 %v232
    %319 = vmatprep.mubr.f32.mxu0 %v215
    %320 = vmatmul.mubr.f32.gmra.mxu0 %v214
    %v321 = vpop.f32.mrf.mxu0
    %v322 = vadd.f32 %v253, %v321
    %v323 = vpop.f32.mrf.mxu0
    %324 = vdwg.mxu0
    %v325 = vmax.f32 %v322, 0.0
    %v326 = vld [vmem:[#allocation7] sm:$0xff]
    %v327 = vld [vmem:[#allocation7 + $0x8] sm:$0xff]
    %v328 = vld [vmem:[#allocation7 + $0x10] sm:$0xff]
    %v329 = vld [vmem:[#allocation7 + $0x18] sm:$0xff]
    %v330 = vld [vmem:[#allocation7 + $0x20] sm:$0xff]
    %v331 = vld [vmem:[#allocation7 + $0x28] sm:$0xff]
    %v332 = vld [vmem:[#allocation7 + $0x30] sm:$0xff]
    %v333 = vld [vmem:[#allocation7 + $0x38] sm:$0xff]
    %v334 = vld [vmem:[#allocation7 + $0x40] sm:$0xff]
    %v335 = vld [vmem:[#allocation7 + $0x48] sm:$0xff]
    %v336 = vld [vmem:[#allocation7 + $0x50] sm:$0xff]
    %v337 = vld [vmem:[#allocation7 + $0x58] sm:$0xff]
    %v338 = vld [vmem:[#allocation7 + $0x60] sm:$0xff]
    %v339 = vld [vmem:[#allocation7 + $0x68] sm:$0xff]
    %v340 = vld [vmem:[#allocation7 + $0x70] sm:$0xff]
    %v341 = vld [vmem:[#allocation7 + $0x78] sm:$0xff]
    %v342 = vld [vmem:[%s6] sm:$0x1]
    %v344 = vlaneseq
    %v345 = vshrl.u32 %v344, 7
    %v346 = vsub.s32 0, %v345
    %v347 = vrot.slane %v342, %v346
    %349 = vmatprep.subr.mxu0 0.0
    %350 = vmatpush1.msra.mxu0 %v341
    %351 = vmatprep.subr.mxu0 0.0
    %352 = vmatpush1.msra.mxu0 %v340
    %353 = vmatprep.subr.mxu0 0.0
    %354 = vmatpush1.msra.mxu0 %v339
    %355 = vmatprep.subr.mxu0 0.0
    %356 = vmatpush1.msra.mxu0 %v338
    %357 = vmatprep.subr.mxu0 0.0
    %358 = vmatpush1.msra.mxu0 %v337
    %359 = vmatprep.subr.mxu0 0.0
    %360 = vmatpush1.msra.mxu0 %v336
    %361 = vmatprep.subr.mxu0 0.0
    %362 = vmatpush1.msra.mxu0 %v335
    %363 = vmatprep.subr.mxu0 0.0
    %364 = vmatpush1.msra.mxu0 %v334
    %365 = vmatprep.subr.mxu0 0.0
    %366 = vmatpush1.msra.mxu0 %v333
    %367 = vmatprep.subr.mxu0 0.0
    %368 = vmatpush1.msra.mxu0 %v332
    %369 = vmatprep.subr.mxu0 0.0
    %370 = vmatpush1.msra.mxu0 %v331
    %371 = vmatprep.subr.mxu0 0.0
    %372 = vmatpush1.msra.mxu0 %v330
    %373 = vmatprep.subr.mxu0 0.0
    %374 = vmatpush1.msra.mxu0 %v329
    %375 = vmatprep.subr.mxu0 0.0
    %376 = vmatpush1.msra.mxu0 %v328
    %377 = vmatprep.subr.mxu0 0.0
    %378 = vmatpush1.msra.mxu0 %v327
    %379 = vmatprep.subr.mxu0 0.0
    %380 = vmatpush1.msra.mxu0 %v326
    %381 = vmatprep.subr.mxu0 0.0
    %382 = vmatpush2.msra.mxu0 0.0
    %383 = vmatprep.subr.mxu0 0.0
    %384 = vmatpush2.msra.mxu0 0.0
    %385 = vmatprep.subr.mxu0 0.0
    %386 = vmatpush2.msra.mxu0 0.0
    %387 = vmatprep.subr.mxu0 0.0
    %388 = vmatpush2.msra.mxu0 0.0
    %389 = vmatprep.subr.mxu0 0.0
    %390 = vmatpush2.msra.mxu0 0.0
    %391 = vmatprep.subr.mxu0 0.0
    %392 = vmatpush2.msra.mxu0 0.0
    %393 = vmatprep.subr.mxu0 0.0
    %394 = vmatpush2.msra.mxu0 0.0
    %395 = vmatprep.subr.mxu0 0.0
    %396 = vmatpush2.msra.mxu0 0.0
    %397 = vmatprep.subr.mxu0 0.0
    %398 = vmatpush2.msra.mxu0 0.0
    %399 = vmatprep.subr.mxu0 0.0
    %400 = vmatpush2.msra.mxu0 0.0
    %401 = vmatprep.subr.mxu0 0.0
    %402 = vmatpush2.msra.mxu0 0.0
    %403 = vmatprep.subr.mxu0 0.0
    %404 = vmatpush2.msra.mxu0 0.0
    %405 = vmatprep.subr.mxu0 0.0
    %406 = vmatpush2.msra.mxu0 0.0
    %407 = vmatprep.subr.mxu0 0.0
    %408 = vmatpush2.msra.mxu0 0.0
    %409 = vmatprep.subr.mxu0 0.0
    %410 = vmatpush2.msra.mxu0 0.0
    %411 = vmatprep.subr.mxu0 0.0
    %412 = vmatpush2.msra.mxu0 0.0
    %413 = vmatprep.mubr.f32.mxu0 0.0
    %414 = vmatmul.mubr.f32.gmra.mxu0 %v325
    %v415 = vpop.f32.mrf.mxu0
    %v416 = vadd.f32 %v347, %v415
    %v417 = vpop.f32.mrf.mxu0
    %418 = vdwg.mxu0
    %v419 = vmax.f32 %v416, 0.0
    %v420 = vld [vmem:[#allocation9] sm:$0xff]
    %v421 = vld [vmem:[#allocation9 + $0x8] sm:$0xff]
    %v422 = vld [vmem:[#allocation9 + $0x10] sm:$0xff]
    %v423 = vld [vmem:[#allocation9 + $0x18] sm:$0xff]
    %v424 = vld [vmem:[#allocation9 + $0x20] sm:$0xff]
    %v425 = vld [vmem:[#allocation9 + $0x28] sm:$0xff]
    %v426 = vld [vmem:[#allocation9 + $0x30] sm:$0xff]
    %v427 = vld [vmem:[#allocation9 + $0x38] sm:$0xff]
    %v428 = vld [vmem:[#allocation9 + $0x40] sm:$0xff]
    %v429 = vld [vmem:[#allocation9 + $0x48] sm:$0xff]
    %v430 = vld [vmem:[#allocation9 + $0x50] sm:$0xff]
    %v431 = vld [vmem:[#allocation9 + $0x58] sm:$0xff]
    %v432 = vld [vmem:[#allocation9 + $0x60] sm:$0xff]
    %v433 = vld [vmem:[#allocation9 + $0x68] sm:$0xff]
    %v434 = vld [vmem:[#allocation9 + $0x70] sm:$0xff]
    %v435 = vld [vmem:[#allocation9 + $0x78] sm:$0xff]
    %v436 = vld [vmem:[%s8] sm:$0x1]
    %v438 = vlaneseq
    %v439 = vshrl.u32 %v438, 7
    %v440 = vsub.s32 0, %v439
    %v441 = vrot.slane %v436, %v440
    %443 = vmatprep.subr.mxu0 0.0
    %444 = vmatpush1.msra.mxu0 %v435
    %445 = vmatprep.subr.mxu0 0.0
    %446 = vmatpush1.msra.mxu0 %v434
    %447 = vmatprep.subr.mxu0 0.0
    %448 = vmatpush1.msra.mxu0 %v433
    %449 = vmatprep.subr.mxu0 0.0
    %450 = vmatpush1.msra.mxu0 %v432
    %451 = vmatprep.subr.mxu0 0.0
    %452 = vmatpush1.msra.mxu0 %v431
    %453 = vmatprep.subr.mxu0 0.0
    %454 = vmatpush1.msra.mxu0 %v430
    %455 = vmatprep.subr.mxu0 0.0
    %456 = vmatpush1.msra.mxu0 %v429
    %457 = vmatprep.subr.mxu0 0.0
    %458 = vmatpush1.msra.mxu0 %v428
    %459 = vmatprep.subr.mxu0 0.0
    %460 = vmatpush1.msra.mxu0 %v427
    %461 = vmatprep.subr.mxu0 0.0
    %462 = vmatpush1.msra.mxu0 %v426
    %463 = vmatprep.subr.mxu0 0.0
    %464 = vmatpush1.msra.mxu0 %v425
    %465 = vmatprep.subr.mxu0 0.0
    %466 = vmatpush1.msra.mxu0 %v424
    %467 = vmatprep.subr.mxu0 0.0
    %468 = vmatpush1.msra.mxu0 %v423
    %469 = vmatprep.subr.mxu0 0.0
    %470 = vmatpush1.msra.mxu0 %v422
    %471 = vmatprep.subr.mxu0 0.0
    %472 = vmatpush1.msra.mxu0 %v421
    %473 = vmatprep.subr.mxu0 0.0
    %474 = vmatpush1.msra.mxu0 %v420
    %475 = vmatprep.subr.mxu0 0.0
    %476 = vmatpush2.msra.mxu0 0.0
    %477 = vmatprep.subr.mxu0 0.0
    %478 = vmatpush2.msra.mxu0 0.0
    %479 = vmatprep.subr.mxu0 0.0
    %480 = vmatpush2.msra.mxu0 0.0
    %481 = vmatprep.subr.mxu0 0.0
    %482 = vmatpush2.msra.mxu0 0.0
    %483 = vmatprep.subr.mxu0 0.0
    %484 = vmatpush2.msra.mxu0 0.0
    %485 = vmatprep.subr.mxu0 0.0
    %486 = vmatpush2.msra.mxu0 0.0
    %487 = vmatprep.subr.mxu0 0.0
    %488 = vmatpush2.msra.mxu0 0.0
    %489 = vmatprep.subr.mxu0 0.0
    %490 = vmatpush2.msra.mxu0 0.0
    %491 = vmatprep.subr.mxu0 0.0
    %492 = vmatpush2.msra.mxu0 0.0
    %493 = vmatprep.subr.mxu0 0.0
    %494 = vmatpush2.msra.mxu0 0.0
    %495 = vmatprep.subr.mxu0 0.0
    %496 = vmatpush2.msra.mxu0 0.0
    %497 = vmatprep.subr.mxu0 0.0
    %498 = vmatpush2.msra.mxu0 0.0
    %499 = vmatprep.subr.mxu0 0.0
    %500 = vmatpush2.msra.mxu0 0.0
    %501 = vmatprep.subr.mxu0 0.0
    %502 = vmatpush2.msra.mxu0 0.0
    %503 = vmatprep.subr.mxu0 0.0
    %504 = vmatpush2.msra.mxu0 0.0
    %505 = vmatprep.subr.mxu0 0.0
    %506 = vmatpush2.msra.mxu0 0.0
    %507 = vmatprep.mubr.f32.mxu0 0.0
    %508 = vmatmul.mubr.f32.gmra.mxu0 %v419
    %v509 = vpop.f32.mrf.mxu0
    %v510 = vadd.f32 %v441, %v509
    %v511 = vpop.f32.mrf.mxu0
    %512 = vdwg.mxu0
    %v513 = vmax.f32 %v510, 0.0
    %v514 = vld [vmem:[#allocation10] sm:$0xff]
    %v515 = vld [vmem:[#allocation10 + $0x8] sm:$0xff]
    %v516 = vld [vmem:[#allocation10 + $0x10] sm:$0xff]
    %v517 = vld [vmem:[#allocation10 + $0x18] sm:$0xff]
    %v518 = vld [vmem:[#allocation10 + $0x20] sm:$0xff]
    %v519 = vld [vmem:[#allocation10 + $0x28] sm:$0xff]
    %v520 = vld [vmem:[#allocation10 + $0x30] sm:$0xff]
    %v521 = vld [vmem:[#allocation10 + $0x38] sm:$0xff]
    %v522 = vld [vmem:[#allocation10 + $0x40] sm:$0xff]
    %v523 = vld [vmem:[#allocation10 + $0x48] sm:$0xff]
    %v524 = vld [vmem:[#allocation10 + $0x50] sm:$0xff]
    %v525 = vld [vmem:[#allocation10 + $0x58] sm:$0xff]
    %v526 = vld [vmem:[#allocation10 + $0x60] sm:$0xff]
    %v527 = vld [vmem:[#allocation10 + $0x68] sm:$0xff]
    %v528 = vld [vmem:[#allocation10 + $0x70] sm:$0xff]
    %v529 = vld [vmem:[#allocation10 + $0x78] sm:$0xff]
    %v530 = vld [vmem:[%s10] sm:$0x1]
    %v532 = vlaneseq
    %v533 = vshrl.u32 %v532, 7
    %v534 = vsub.s32 0, %v533
    %v535 = vrot.slane %v530, %v534
    %537 = vmatprep.subr.mxu0 0.0
    %538 = vmatpush1.msra.mxu0 %v529
    %539 = vmatprep.subr.mxu0 0.0
    %540 = vmatpush1.msra.mxu0 %v528
    %541 = vmatprep.subr.mxu0 0.0
    %542 = vmatpush1.msra.mxu0 %v527
    %543 = vmatprep.subr.mxu0 0.0
    %544 = vmatpush1.msra.mxu0 %v526
    %545 = vmatprep.subr.mxu0 0.0
    %546 = vmatpush1.msra.mxu0 %v525
    %547 = vmatprep.subr.mxu0 0.0
    %548 = vmatpush1.msra.mxu0 %v524
    %549 = vmatprep.subr.mxu0 0.0
    %550 = vmatpush1.msra.mxu0 %v523
    %551 = vmatprep.subr.mxu0 0.0
    %552 = vmatpush1.msra.mxu0 %v522
    %553 = vmatprep.subr.mxu0 0.0
    %554 = vmatpush1.msra.mxu0 %v521
    %555 = vmatprep.subr.mxu0 0.0
    %556 = vmatpush1.msra.mxu0 %v520
    %557 = vmatprep.subr.mxu0 0.0
    %558 = vmatpush1.msra.mxu0 %v519
    %559 = vmatprep.subr.mxu0 0.0
    %560 = vmatpush1.msra.mxu0 %v518
    %561 = vmatprep.subr.mxu0 0.0
    %562 = vmatpush1.msra.mxu0 %v517
    %563 = vmatprep.subr.mxu0 0.0
    %564 = vmatpush1.msra.mxu0 %v516
    %565 = vmatprep.subr.mxu0 0.0
    %566 = vmatpush1.msra.mxu0 %v515
    %567 = vmatprep.subr.mxu0 0.0
    %568 = vmatpush1.msra.mxu0 %v514
    %569 = vmatprep.subr.mxu0 0.0
    %570 = vmatpush2.msra.mxu0 0.0
    %571 = vmatprep.subr.mxu0 0.0
    %572 = vmatpush2.msra.mxu0 0.0
    %573 = vmatprep.subr.mxu0 0.0
    %574 = vmatpush2.msra.mxu0 0.0
    %575 = vmatprep.subr.mxu0 0.0
    %576 = vmatpush2.msra.mxu0 0.0
    %577 = vmatprep.subr.mxu0 0.0
    %578 = vmatpush2.msra.mxu0 0.0
    %579 = vmatprep.subr.mxu0 0.0
    %580 = vmatpush2.msra.mxu0 0.0
    %581 = vmatprep.subr.mxu0 0.0
    %582 = vmatpush2.msra.mxu0 0.0
    %583 = vmatprep.subr.mxu0 0.0
    %584 = vmatpush2.msra.mxu0 0.0
    %585 = vmatprep.subr.mxu0 0.0
    %586 = vmatpush2.msra.mxu0 0.0
    %587 = vmatprep.subr.mxu0 0.0
    %588 = vmatpush2.msra.mxu0 0.0
    %589 = vmatprep.subr.mxu0 0.0
    %590 = vmatpush2.msra.mxu0 0.0
    %591 = vmatprep.subr.mxu0 0.0
    %592 = vmatpush2.msra.mxu0 0.0
    %593 = vmatprep.subr.mxu0 0.0
    %594 = vmatpush2.msra.mxu0 0.0
    %595 = vmatprep.subr.mxu0 0.0
    %596 = vmatpush2.msra.mxu0 0.0
    %597 = vmatprep.subr.mxu0 0.0
    %598 = vmatpush2.msra.mxu0 0.0
    %599 = vmatprep.subr.mxu0 0.0
    %600 = vmatpush2.msra.mxu0 0.0
    %601 = vmatprep.mubr.f32.mxu0 0.0
    %602 = vmatmul.mubr.f32.gmra.mxu0 %v513
    %v603 = vpop.f32.mrf.mxu0
    %v604 = vadd.f32 %v535, %v603
    %v605 = vpop.f32.mrf.mxu0
    %606 = vdwg.mxu0
    %v607 = vmax.f32 %v604, 0.0
    %vm608 = vcmask 7168
    %609 = vst.msk [vmem:[%s11] sm:$0xff] %vm608, %v607
    // Predicated region
    $region70: #{tpu_custom_call.1} parent=1 // pred_check
      _
    $region71: #{tpu_custom_call.1} parent=1 // pred_check_branch
      %611 = sbr.rel (0) target = $region73
    $region72: #{tpu_custom_call.1} parent=1 // pred_region
      _
    $region73: #{tpu_custom_call.1} parent=1 // pred_fallthru
      _
    // Predicated region
    $region74: #{tpu_custom_call.1} parent=1 // pred_check
      _
    $region75: #{tpu_custom_call.1} parent=1 // pred_check_branch
      %613 = sbr.rel (0) target = $region77
    $region76: #{tpu_custom_call.1} parent=1 // pred_region
      _
    $region77: #{tpu_custom_call.1} parent=1 // pred_fallthru
      _
    %614 = vsyncpa [#allocation3], 1
    %615 = vsyncpa [#allocation5], 1
    %616 = vsyncpa [#allocation8], 1
    %617 = vsyncpa [#allocation11], 1

</llo_original>
